<compile_context>
chip_gen: v7x
topology: tpu7x:2x2x1
jax: 0.10.0
libtpu: 0.0.40
codegen_flags: <defaults>
</compile_context>

<pallas_src>
import functools
import math

import jax
import jax.numpy as jnp
from jax.experimental import pallas as pl
from jax.experimental.pallas import tpu as pltpu


def _round_up(a, m):
    return ((a + m - 1) // m) * m


def net_kernel(x_ref, w1_ref, b1_ref, w2_ref, b2_ref, o_ref):
    # fc1: [TB, S](bf16) @ [S, Hp](bf16) -> f32 acc, bias + ReLU in f32.
    h = jnp.dot(x_ref[...], w1_ref[...], preferred_element_type=jnp.float32)
    h = jnp.maximum(h + b1_ref[...], 0.0)
    # fc2: [TB, Hp](bf16) @ [Hp, Lp](bf16) -> f32 acc, bias in f32.
    # Padded label lanes carry a -1e30 bias -> exp underflows to exactly 0 below.
    logits = jnp.dot(h.astype(jnp.bfloat16), w2_ref[...],
                     preferred_element_type=jnp.float32)
    logits = logits + b2_ref[...]
    # Numerically stable softmax over the (padded) label axis.
    m = jnp.max(logits, axis=-1, keepdims=True)          # XLU lane reduce
    e = jnp.exp(logits - m)                               # EUP
    denom = jnp.sum(e, axis=-1, keepdims=True)            # XLU lane reduce
    inv = pl.reciprocal(denom, approx=True)                # EUP slot (free here)
    inv = inv * (2.0 - denom * inv)                        # one Newton step: err ~2^-24
    o_ref[...] = e * inv                                   # lane-dense [TB, Lp] store


def prepare_params(w1, b1, w2, b2):
    """One-time weight prep (call once, reuse across forwards):
    transpose to [in, out], zero-pad hidden->128 and labels->multiple of 128,
    cast MXU operands to bf16. Zero padding is exact through matmul+ReLU; padded
    label lanes get bias -1e30 so they contribute nothing to softmax."""
    H, S = w1.shape          # fc1 weight: [hidden, sample_num]
    L = w2.shape[0]          # fc2 weight: [label_num, hidden]
    Hp = _round_up(H, 128)
    Lp = _round_up(L, 128)

    w1_t = jnp.zeros((S, Hp), jnp.float32).at[:, :H].set(jnp.asarray(w1, jnp.float32).T)
    b1_r = jnp.zeros((1, Hp), jnp.float32).at[0, :H].set(jnp.asarray(b1, jnp.float32))
    w2_t = jnp.zeros((Hp, Lp), jnp.float32).at[:H, :L].set(jnp.asarray(w2, jnp.float32).T)
    b2_r = jnp.full((1, Lp), -1e30, jnp.float32).at[0, :L].set(jnp.asarray(b2, jnp.float32))
    return w1_t.astype(jnp.bfloat16), b1_r, w2_t.astype(jnp.bfloat16), b2_r


@functools.partial(jax.jit, static_argnames=("label_num",))
def net_forward(x, w1_t, b1_r, w2_t, b2_r, *, label_num):
    """x: [B, sample_num]; params from prepare_params(). Returns [B, label_num]."""
    B, S = x.shape
    Hp = w1_t.shape[1]
    Lp = w2_t.shape[1]

    # Batch tile: multiple of 16 (bf16 sublane packing), capped at 512 rows to keep
    # the x tile + output tile comfortably within VMEM while amortizing step overhead.
    TB = min(512, _round_up(B, 16))
    Bp = _round_up(B, TB)

    x_bf = jnp.asarray(x, jnp.bfloat16)
    if Bp != B:
        x_bf = jnp.pad(x_bf, ((0, Bp - B), (0, 0)))

    out = pl.pallas_call(
        net_kernel,
        out_shape=jax.ShapeDtypeStruct((Bp, Lp), jnp.float32),
        grid=(Bp // TB,),
        in_specs=[
            pl.BlockSpec((TB, S), lambda i: (i, 0)),    # x: streamed per batch tile
            pl.BlockSpec((S, Hp), lambda i: (0, 0)),    # w1: VMEM-resident
            pl.BlockSpec((1, Hp), lambda i: (0, 0)),    # b1: VMEM-resident
            pl.BlockSpec((Hp, Lp), lambda i: (0, 0)),   # w2: VMEM-resident
            pl.BlockSpec((1, Lp), lambda i: (0, 0)),    # b2: VMEM-resident
        ],
        out_specs=pl.BlockSpec((TB, Lp), lambda i: (i, 0)),
        compiler_params=pltpu.CompilerParams(
            dimension_semantics=("parallel",),          # megacore sharding on v7x
        ),
    )(x_bf, w1_t, b1_r, w2_t, b2_r)

    return out[:B, :label_num]


def init_linear_params(key, in_features, out_features):
    """Deterministic init mimicking torch nn.Linear default (uniform +/- 1/sqrt(fan_in))."""
    kw, kb = jax.random.split(key)
    bound = 1.0 / math.sqrt(in_features)
    w = jax.random.uniform(kw, (out_features, in_features), jnp.float32, -bound, bound)
    b = jax.random.uniform(kb, (out_features,), jnp.float32, -bound, bound)
    return w, b


if __name__ == "__main__":
    # Small shapes consistent with the module: Net(sample_num, label_num), hidden=100.
    batch = 8
    sample_num = 32
    hidden = 100
    label_num = 16

    key = jax.random.PRNGKey(0)
    kx, k1, k2 = jax.random.split(key, 3)

    x = jax.random.normal(kx, (batch, sample_num), jnp.float32)
    w1, b1 = init_linear_params(k1, sample_num, hidden)   # fc1
    w2, b2 = init_linear_params(k2, hidden, label_num)    # fc2

    params = prepare_params(w1, b1, w2, b2)               # one-time prep (hoisted)
    out = net_forward(x, *params, label_num=label_num)
    out = jax.block_until_ready(out)

    # Pure-JAX f32 reference (eval-mode dropout = identity).
    h_ref = jnp.maximum(x @ w1.T + b1, 0.0)
    ref = jax.nn.softmax(h_ref @ w2.T + b2, axis=-1)

    assert out.shape == (batch, label_num)
    # bf16 MXU inputs -> compare against f32 reference with bf16-level tolerance.
    assert jnp.allclose(out, ref, atol=2e-2), float(jnp.max(jnp.abs(out - ref)))
    assert jnp.allclose(jnp.sum(out, axis=-1), 1.0, atol=1e-5)

    print("KERNEL_OK")
</pallas_src>

<mosaic_0001>
module attributes {stable_mosaic.version = 11 : i64} {
  func.func @net_kernel(%arg0: i32, %arg1: memref<16x32xbf16, #tpu.memory_space<vmem>>, %arg2: memref<32x128xbf16, #tpu.memory_space<vmem>>, %arg3: memref<1x128xf32, #tpu.memory_space<vmem>>, %arg4: memref<128x128xbf16, #tpu.memory_space<vmem>>, %arg5: memref<1x128xf32, #tpu.memory_space<vmem>>, %arg6: memref<16x128xf32, #tpu.memory_space<vmem>>) attributes {dimension_semantics = [#tpu.dimension_semantics<parallel>], iteration_bounds = array<i64: 1>, scalar_prefetch = 0 : i64, scratch_operands = 0 : i64, tpu.core_type = #tpu.core_type<tc>, window_params = [{transform_indices = @transform_0, window_bounds = array<i64: 16, 32>}, {pipeline_mode = #tpu.pipeline_mode<synchronous>, transform_indices = @transform_1, window_bounds = array<i64: 32, 128>}, {pipeline_mode = #tpu.pipeline_mode<synchronous>, transform_indices = @transform_2, window_bounds = array<i64: 1, 128>}, {pipeline_mode = #tpu.pipeline_mode<synchronous>, transform_indices = @transform_3, window_bounds = array<i64: 128, 128>}, {pipeline_mode = #tpu.pipeline_mode<synchronous>, transform_indices = @transform_4, window_bounds = array<i64: 1, 128>}, {transform_indices = @transform_5, window_bounds = array<i64: 16, 128>}]} {
    %c0 = arith.constant 0 : index
    %c0_0 = arith.constant 0 : index
    %0 = vector.load %arg1[%c0, %c0_0] : memref<16x32xbf16, #tpu.memory_space<vmem>>, vector<16x32xbf16>
    %c0_1 = arith.constant 0 : index
    %c0_2 = arith.constant 0 : index
    %1 = vector.load %arg2[%c0_1, %c0_2] : memref<32x128xbf16, #tpu.memory_space<vmem>>, vector<32x128xbf16>
    %cst = arith.constant dense<0.000000e+00> : vector<16x128xf32>
    %2 = tpu.matmul %0, %1, %cst {dimension_numbers = #tpu.dot_dimension_numbers<[1], [0], [0], [1], [0, 0, 1, 1], [], []>} : vector<16x32xbf16>, vector<32x128xbf16>, vector<16x128xf32> -> vector<16x128xf32>
    %c0_3 = arith.constant 0 : index
    %c0_4 = arith.constant 0 : index
    %3 = vector.load %arg3[%c0_3, %c0_4] : memref<1x128xf32, #tpu.memory_space<vmem>>, vector<1x128xf32>
    %4 = vector.broadcast %3 : vector<1x128xf32> to vector<16x128xf32>
    %5 = arith.addf %2, %4 : vector<16x128xf32>
    %cst_5 = arith.constant 0.000000e+00 : f32
    %6 = vector.broadcast %cst_5 : f32 to vector<16x128xf32>
    %7 = arith.maximumf %5, %6 : vector<16x128xf32>
    %8 = arith.truncf %7 : vector<16x128xf32> to vector<16x128xbf16>
    %c0_6 = arith.constant 0 : index
    %c0_7 = arith.constant 0 : index
    %9 = vector.load %arg4[%c0_6, %c0_7] : memref<128x128xbf16, #tpu.memory_space<vmem>>, vector<128x128xbf16>
    %cst_8 = arith.constant dense<0.000000e+00> : vector<16x128xf32>
    %10 = tpu.matmul %8, %9, %cst_8 {dimension_numbers = #tpu.dot_dimension_numbers<[1], [0], [0], [1], [0, 0, 1, 1], [], []>} : vector<16x128xbf16>, vector<128x128xbf16>, vector<16x128xf32> -> vector<16x128xf32>
    %c0_9 = arith.constant 0 : index
    %c0_10 = arith.constant 0 : index
    %11 = vector.load %arg5[%c0_9, %c0_10] : memref<1x128xf32, #tpu.memory_space<vmem>>, vector<1x128xf32>
    %12 = vector.broadcast %11 : vector<1x128xf32> to vector<16x128xf32>
    %13 = arith.addf %10, %12 : vector<16x128xf32>
    %cst_11 = arith.constant dense<0xFF800000> : vector<16xf32>
    %14 = vector.multi_reduction <maximumf>, %13, %cst_11 [1] : vector<16x128xf32> to vector<16xf32>
    %15 = vector.shape_cast %14 : vector<16xf32> to vector<16x1xf32>
    %16 = vector.broadcast %15 : vector<16x1xf32> to vector<16x128xf32>
    %17 = arith.subf %13, %16 : vector<16x128xf32>
    %18 = math.exp %17 : vector<16x128xf32>
    %cst_12 = arith.constant dense<0.000000e+00> : vector<16xf32>
    %19 = vector.multi_reduction <add>, %18, %cst_12 [1] : vector<16x128xf32> to vector<16xf32>
    %20 = vector.shape_cast %19 : vector<16xf32> to vector<16x1xf32>
    %21 = tpu.reciprocal %20 {approx = true} : vector<16x1xf32> -> vector<16x1xf32>
    %22 = arith.mulf %20, %21 : vector<16x1xf32>
    %cst_13 = arith.constant 2.000000e+00 : f32
    %23 = vector.broadcast %cst_13 : f32 to vector<16x1xf32>
    %24 = arith.subf %23, %22 : vector<16x1xf32>
    %25 = arith.mulf %21, %24 : vector<16x1xf32>
    %26 = vector.broadcast %25 : vector<16x1xf32> to vector<16x128xf32>
    %27 = arith.mulf %18, %26 : vector<16x128xf32>
    %c0_14 = arith.constant 0 : index
    %c0_15 = arith.constant 0 : index
    %28 = vector.load %arg6[%c0_14, %c0_15] : memref<16x128xf32, #tpu.memory_space<vmem>>, vector<16x128xf32>
    tpu.vector_store %arg6[%c0_14, %c0_15], %27 {strides = array<i32>} : memref<16x128xf32, #tpu.memory_space<vmem>>, vector<16x128xf32>,
    return
  }
  func.func @transform_0(%arg0: i32) -> (i32, i32) {
    %c0_i32 = arith.constant 0 : i32
    %c0_i32_0 = arith.constant 0 : i32
    return %arg0, %c0_i32 : i32, i32
  }
  func.func @transform_1(%arg0: i32) -> (i32, i32) {
    %c0_i32 = arith.constant 0 : i32
    %c0_i32_0 = arith.constant 0 : i32
    %c0_i32_1 = arith.constant 0 : i32
    return %c0_i32, %c0_i32_0 : i32, i32
  }
  func.func @transform_2(%arg0: i32) -> (i32, i32) {
    %c0_i32 = arith.constant 0 : i32
    %c0_i32_0 = arith.constant 0 : i32
    %c0_i32_1 = arith.constant 0 : i32
    return %c0_i32, %c0_i32_0 : i32, i32
  }
  func.func @transform_3(%arg0: i32) -> (i32, i32) {
    %c0_i32 = arith.constant 0 : i32
    %c0_i32_0 = arith.constant 0 : i32
    %c0_i32_1 = arith.constant 0 : i32
    return %c0_i32, %c0_i32_0 : i32, i32
  }
  func.func @transform_4(%arg0: i32) -> (i32, i32) {
    %c0_i32 = arith.constant 0 : i32
    %c0_i32_0 = arith.constant 0 : i32
    %c0_i32_1 = arith.constant 0 : i32
    return %c0_i32, %c0_i32_0 : i32, i32
  }
  func.func @transform_5(%arg0: i32) -> (i32, i32) {
    %c0_i32 = arith.constant 0 : i32
    %c0_i32_0 = arith.constant 0 : i32
    return %arg0, %c0_i32 : i32, i32
  }
}

</mosaic_0001>

<llo_original>
// kernel: net_forward.1
$region0: #{net_forward.1}
  #allocation0 [shape = 'u32[]', space=smem, size = 0x4, offset = 0x4, fixed_abs, tag = 'smem constant byte address 0x4 - core index']
  #allocation1 [shape = 'u32[144,128]{1,0:T(1,128)}', space=vmem, size = 0x12000, scoped, tag = 'internal scratch']
  %s0 = inlined_call_operand.vmem [shape: bf16[16,32], index: 0, kind: input, shape index: {}]
  %s1 = inlined_call_operand.vmem [shape: bf16[32,128], index: 1, kind: input, shape index: {}]
  %s2 = inlined_call_operand.vmem [shape: f32[1,128], index: 2, kind: input, shape index: {}]
  %s3 = inlined_call_operand.hbm [shape: bf16[128,128], index: 3, kind: input, shape index: {}]
  %s4 = inlined_call_operand.vmem [shape: f32[1,128], index: 4, kind: input, shape index: {}]
  %s5 = inlined_call_operand.vmem [shape: f32[16,128], index: 5, kind: output, shape index: {}]
  %s6 = sld [smem:[#allocation0]]
  $region34: #{net_forward.1} parent=0
    _
  %s8 = ssub.s32 1, %s6
  %s9 = scalar_select 0, %s8, %s6
  $region1: #{net_forward.1} parent=0
    #allocation2 [shape = 'u8[32768]{0}', space=vmem, size = 0x8000, scoped, tag = 'input window, operand 3, single buffered']
    #allocation3 [shape = 's32[1]{0}', space=sflag, size = 0x4, scoped, tag = 'scoped memory for net_forward.1']
    %10 = vsyncpa [#allocation3], 0
    // Predicated region
    $region2: #{net_forward.1} parent=1 // pred_check
      _
    $region3: #{net_forward.1} parent=1 // pred_check_branch
      %12 = sbr.rel (0) target = $region5
    $region4: #{net_forward.1} parent=1 // pred_region
      _
    $region5: #{net_forward.1} parent=1 // pred_fallthru
      _
    // Predicated region
    $region6: #{net_forward.1} parent=1 // pred_check
      _
    $region7: #{net_forward.1} parent=1 // pred_check_branch
      %14 = sbr.rel (0) target = $region9
    $region8: #{net_forward.1} parent=1 // pred_region
      _
    $region9: #{net_forward.1} parent=1 // pred_fallthru
      _
    // Predicated region
    $region10: #{net_forward.1} parent=1 // pred_check
      _
    $region11: #{net_forward.1} parent=1 // pred_check_branch
      %16 = sbr.rel (0) target = $region13
    $region12: #{net_forward.1} parent=1 // pred_region
      _
    $region13: #{net_forward.1} parent=1 // pred_fallthru
      _
    // Predicated region
    $region14: #{net_forward.1} parent=1 // pred_check
      _
    $region15: #{net_forward.1} parent=1 // pred_check_branch
      %18 = sbr.rel (0) target = $region17
    $region16: #{net_forward.1} parent=1 // pred_region
      %s20 = ssub.s32 1024, 1024
      %21 = vsyncadd [#allocation3], %s20
      %s22 = sshll.u32 [#allocation2], 4
      %s23 = int_to_ptr.vmem [resolvable:$true] %s22
      %28 = dma.hbm_to_vmem [thread:$0]  %s3, 1024, %s23, [#allocation3], 64, 64, 4
    $region17: #{net_forward.1} parent=1 // pred_fallthru
      _
    // Predicated region
    $region18: #{net_forward.1} parent=1 // pred_check
      _
    $region19: #{net_forward.1} parent=1 // pred_check_branch
      %30 = sbr.rel (0) target = $region21
    $region20: #{net_forward.1} parent=1 // pred_region
      _
    $region21: #{net_forward.1} parent=1 // pred_fallthru
      _
    // Predicated region
    $region22: #{net_forward.1} parent=1 // pred_check
      _
    $region23: #{net_forward.1} parent=1 // pred_check_branch
      %32 = sbr.rel (0) target = $region25
    $region24: #{net_forward.1} parent=1 // pred_region
      %33 = dma.done [#allocation3], 1024
    $region25: #{net_forward.1} parent=1 // pred_fallthru
      _
    %v35 = vld [vmem:[%s0] sm:$0xf]
    %v36 = vld [vmem:[%s0 + $0x4] sm:$0xf]
    %v37 = vld [vmem:[%s1] sm:$0xf]
    %v38 = vld [vmem:[%s1 + $0x4] sm:$0xf]
    %v39 = vld [vmem:[%s1 + $0x8] sm:$0xf]
    %v40 = vld [vmem:[%s1 + $0xc] sm:$0xf]
    %v41 = vld [vmem:[%s2] sm:$0x1]
    %v43 = vlaneseq
    %v44 = vshrl.u32 %v43, 7
    %v45 = vsub.s32 0, %v44
    %v46 = vrot.slane %v41, %v45
    %v50 = vunpack.c.l.b16 %v35
    %v51 = vunpack.c.l.b16 %v36
    %v52 = vpack.c.b16 %v51, %v50
    %v57 = vunpack.c.l.b16 %v37
    %v58 = vunpack.c.l.b16 %v38
    %v59 = vunpack.c.l.b16 %v39
    %v60 = vunpack.c.l.b16 %v40
    %v61 = vpack.c.b16 %v58, %v57
    %v62 = vpack.c.b16 %v60, %v59
    %vm65 = vcmask 261120
    %v67 = vsel %vm65, %v52, 0
    %69 = vmatprep.subr.bf16.mxu0 0
    %70 = vmatpush1.bf16.msra.mxu0 %v61
    %71 = vmatprep.subr.bf16.mxu0 0
    %72 = vmatpush1.bf16.msra.mxu0 %v62
    %73 = vmatprep.subr.bf16.mxu0 0
    %74 = vmatpush1.bf16.msra.mxu0 0
    %75 = vmatprep.subr.bf16.mxu0 0
    %76 = vmatpush1.bf16.msra.mxu0 0
    %77 = vmatprep.subr.bf16.mxu0 0
    %78 = vmatpush1.bf16.msra.mxu0 0
    %79 = vmatprep.subr.bf16.mxu0 0
    %80 = vmatpush1.bf16.msra.mxu0 0
    %81 = vmatprep.subr.bf16.mxu0 0
    %82 = vmatpush1.bf16.msra.mxu0 0
    %83 = vmatprep.subr.bf16.mxu0 0
    %84 = vmatpush1.bf16.msra.mxu0 0
    %85 = vmatprep.subr.bf16.mxu0 0
    %86 = vmatpush1.bf16.msra.mxu0 0
    %87 = vmatprep.subr.bf16.mxu0 0
    %88 = vmatpush1.bf16.msra.mxu0 0
    %89 = vmatprep.subr.bf16.mxu0 0
    %90 = vmatpush1.bf16.msra.mxu0 0
    %91 = vmatprep.subr.bf16.mxu0 0
    %92 = vmatpush1.bf16.msra.mxu0 0
    %93 = vmatprep.subr.bf16.mxu0 0
    %94 = vmatpush1.bf16.msra.mxu0 0
    %95 = vmatprep.subr.bf16.mxu0 0
    %96 = vmatpush1.bf16.msra.mxu0 0
    %97 = vmatprep.subr.bf16.mxu0 0
    %98 = vmatpush1.bf16.msra.mxu0 0
    %99 = vmatprep.subr.bf16.mxu0 0
    %100 = vmatpush1.bf16.msra.mxu0 0
    %101 = vmatprep.mubr.bf16.mxu0 0
    %102 = vmatmul.mubr.bf16.gmra.mrb[0].mxu0 %v67
    %v103 = vpop.f32.mrb[0].mxu0
    %v104 = vadd.f32 %v46, %v103
    %v105 = vpop.f32.mrb[0].mxu0
    %v106 = vpop.f32.mrb[0].mxu0
    %v107 = vadd.f32 %v46, %v106
    %v108 = vpop.f32.mrb[0].mxu0
    %109 = vdwg.mxu0
    %v110 = vmax.f32 %v104, 0.0
    %v111 = vmax.f32 %v107, 0.0
    %v112 = vpack.c.bf16 %v111, %v110
    %v113 = vld [vmem:[#allocation2] sm:$0xf]
    %v114 = vld [vmem:[#allocation2 + $0x4] sm:$0xf]
    %v115 = vld [vmem:[#allocation2 + $0x8] sm:$0xf]
    %v116 = vld [vmem:[#allocation2 + $0xc] sm:$0xf]
    %v117 = vld [vmem:[#allocation2 + $0x10] sm:$0xf]
    %v118 = vld [vmem:[#allocation2 + $0x14] sm:$0xf]
    %v119 = vld [vmem:[#allocation2 + $0x18] sm:$0xf]
    %v120 = vld [vmem:[#allocation2 + $0x1c] sm:$0xf]
    %v121 = vld [vmem:[#allocation2 + $0x20] sm:$0xf]
    %v122 = vld [vmem:[#allocation2 + $0x24] sm:$0xf]
    %v123 = vld [vmem:[#allocation2 + $0x28] sm:$0xf]
    %v124 = vld [vmem:[#allocation2 + $0x2c] sm:$0xf]
    %v125 = vld [vmem:[#allocation2 + $0x30] sm:$0xf]
    %v126 = vld [vmem:[#allocation2 + $0x34] sm:$0xf]
    %v127 = vld [vmem:[#allocation2 + $0x38] sm:$0xf]
    %v128 = vld [vmem:[#allocation2 + $0x3c] sm:$0xf]
    %v129 = vld [vmem:[%s4] sm:$0x1]
    %v131 = vlaneseq
    %v132 = vshrl.u32 %v131, 7
    %v133 = vsub.s32 0, %v132
    %v134 = vrot.slane %v129, %v133
    %v152 = vunpack.c.l.b16 %v113
    %v153 = vunpack.c.l.b16 %v114
    %v154 = vunpack.c.l.b16 %v115
    %v155 = vunpack.c.l.b16 %v116
    %v156 = vunpack.c.l.b16 %v117
    %v157 = vunpack.c.l.b16 %v118
    %v158 = vunpack.c.l.b16 %v119
    %v159 = vunpack.c.l.b16 %v120
    %v160 = vunpack.c.l.b16 %v121
    %v161 = vunpack.c.l.b16 %v122
    %v162 = vunpack.c.l.b16 %v123
    %v163 = vunpack.c.l.b16 %v124
    %v164 = vunpack.c.l.b16 %v125
    %v165 = vunpack.c.l.b16 %v126
    %v166 = vunpack.c.l.b16 %v127
    %v167 = vunpack.c.l.b16 %v128
    %v168 = vpack.c.b16 %v153, %v152
    %v169 = vpack.c.b16 %v155, %v154
    %v170 = vpack.c.b16 %v157, %v156
    %v171 = vpack.c.b16 %v159, %v158
    %v172 = vpack.c.b16 %v161, %v160
    %v173 = vpack.c.b16 %v163, %v162
    %v174 = vpack.c.b16 %v165, %v164
    %v175 = vpack.c.b16 %v167, %v166
    %184 = vmatprep.subr.bf16.mxu0 0
    %185 = vmatpush1.bf16.msra.mxu0 %v168
    %186 = vmatprep.subr.bf16.mxu0 0
    %187 = vmatpush1.bf16.msra.mxu0 %v169
    %188 = vmatprep.subr.bf16.mxu0 0
    %189 = vmatpush1.bf16.msra.mxu0 %v170
    %190 = vmatprep.subr.bf16.mxu0 0
    %191 = vmatpush1.bf16.msra.mxu0 %v171
    %192 = vmatprep.subr.bf16.mxu0 0
    %193 = vmatpush1.bf16.msra.mxu0 %v172
    %194 = vmatprep.subr.bf16.mxu0 0
    %195 = vmatpush1.bf16.msra.mxu0 %v173
    %196 = vmatprep.subr.bf16.mxu0 0
    %197 = vmatpush1.bf16.msra.mxu0 %v174
    %198 = vmatprep.subr.bf16.mxu0 0
    %199 = vmatpush1.bf16.msra.mxu0 %v175
    %200 = vmatprep.subr.bf16.mxu0 0
    %201 = vmatpush1.bf16.msra.mxu0 0
    %202 = vmatprep.subr.bf16.mxu0 0
    %203 = vmatpush1.bf16.msra.mxu0 0
    %204 = vmatprep.subr.bf16.mxu0 0
    %205 = vmatpush1.bf16.msra.mxu0 0
    %206 = vmatprep.subr.bf16.mxu0 0
    %207 = vmatpush1.bf16.msra.mxu0 0
    %208 = vmatprep.subr.bf16.mxu0 0
    %209 = vmatpush1.bf16.msra.mxu0 0
    %210 = vmatprep.subr.bf16.mxu0 0
    %211 = vmatpush1.bf16.msra.mxu0 0
    %212 = vmatprep.subr.bf16.mxu0 0
    %213 = vmatpush1.bf16.msra.mxu0 0
    %214 = vmatprep.subr.bf16.mxu0 0
    %215 = vmatpush1.bf16.msra.mxu0 0
    %216 = vmatprep.mubr.bf16.mxu0 0
    %217 = vmatmul.mubr.bf16.gmra.mrb[0].mxu0 %v112
    %v218 = vpop.f32.mrb[0].mxu0
    %v219 = vadd.f32 %v134, %v218
    %v220 = vpop.f32.mrb[0].mxu0
    %v221 = vpop.f32.mrb[0].mxu0
    %v222 = vadd.f32 %v134, %v221
    %v223 = vpop.f32.mrb[0].mxu0
    %224 = vdwg.mxu0
    %225 = vmax.xlane.f32.xlu0 %v219
    %v226 = vpop.xlane.xlu0 %225
    %227 = vmax.xlane.f32.xlu0 %v222
    %v228 = vpop.xlane.xlu0 %227
    %v229 = vsub.f32 %v219, %v226
    %v230 = vsub.f32 %v222, %v228
    %v231 = vmul.f32 %v229, 1.442695
    %v232 = vpow.pop %v231
    %v233 = vmul.f32 %v230, 1.442695
    %v234 = vpow.pop %v233
    %235 = vadd.xlane.f32.xlu0 %v232
    %v236 = vpop.xlane.xlu0 %235
    %237 = vadd.xlane.f32.xlu0 %v234
    %v238 = vpop.xlane.xlu0 %237
    %v239 = vrcp.pop %v236
    %v240 = vrcp.pop %v238
    %v241 = vmul.f32 %v236, %v239
    %v242 = vmul.f32 %v238, %v240
    %v243 = vsub.f32 2.0, %v241
    %v244 = vsub.f32 2.0, %v242
    %v245 = vmul.f32 %v239, %v243
    %v246 = vmul.f32 %v240, %v244
    %v247 = vmul.f32 %v232, %v245
    %v248 = vmul.f32 %v234, %v246
    %249 = vst [vmem:[%s5] sm:$0xff] %v247
    %250 = vst [vmem:[%s5 + $0x8] sm:$0xff] %v248
    // Predicated region
    $region26: #{net_forward.1} parent=1 // pred_check
      _
    $region27: #{net_forward.1} parent=1 // pred_check_branch
      %252 = sbr.rel (0) target = $region29
    $region28: #{net_forward.1} parent=1 // pred_region
      _
    $region29: #{net_forward.1} parent=1 // pred_fallthru
      _
    // Predicated region
    $region30: #{net_forward.1} parent=1 // pred_check
      _
    $region31: #{net_forward.1} parent=1 // pred_check_branch
      %254 = sbr.rel (0) target = $region33
    $region32: #{net_forward.1} parent=1 // pred_region
      _
    $region33: #{net_forward.1} parent=1 // pred_fallthru
      _
    %255 = vsyncpa [#allocation3], 1

</llo_original>
